<compile_context>
chip_gen: v5e
topology: v5e:2x2
jax: 0.10.0
libtpu: 0.0.40
codegen_flags: <defaults>
</compile_context>

<pallas_src>
import jax
import jax.numpy as jnp
from jax import lax
from jax.experimental import pallas as pl
from jax.experimental.pallas import tpu as pltpu

# Network dimensions (torch: Linear(8,6) -> Linear(6,4) -> Linear(4,1)).
D_IN, D_H1, D_H2, D_OUT = 8, 6, 4, 1
LANES = 128

# Packed parameter layout (single 1-D f32 buffer in SMEM).  Weights stored row-major
# as (in_features, out_features) so the kernel computes y = x @ W + b, which matches
# torch.nn.Linear (torch stores W as (out, in) and applies x @ W.T).
_W1_OFF = 0
_B1_OFF = _W1_OFF + D_IN * D_H1      # 48
_W2_OFF = _B1_OFF + D_H1             # 54
_B2_OFF = _W2_OFF + D_H1 * D_H2      # 78
_W3_OFF = _B2_OFF + D_H2             # 82
_B3_OFF = _W3_OFF + D_H2 * D_OUT     # 86
_N_PARAMS = _B3_OFF + D_OUT          # 87


def _sigmoid(x):
    # Mathematically identical to 1/(1+exp(-x)); tanh runs on the EUP slot and
    # avoids the VALU divide of the default logistic lowering.
    return 0.5 * jnp.tanh(0.5 * x) + 0.5


def _mlp_kernel(params_ref, xt_ref, o_ref):
    """params_ref: f32[87] in SMEM.
    xt_ref: (8, TS, 128) VMEM block, batch spread over (sublane, lane).
    o_ref:  (TS, 128) VMEM block (lane-dense output)."""
    # Hoist all 87 parameter scalar reads out of the strip-mine loop.
    w1 = [[params_ref[_W1_OFF + k * D_H1 + j] for j in range(D_H1)] for k in range(D_IN)]
    b1 = [params_ref[_B1_OFF + j] for j in range(D_H1)]
    w2 = [[params_ref[_W2_OFF + k * D_H2 + j] for j in range(D_H2)] for k in range(D_H1)]
    b2 = [params_ref[_B2_OFF + j] for j in range(D_H2)]
    w3 = [params_ref[_W3_OFF + k] for k in range(D_H2)]
    b3 = params_ref[_B3_OFF]

    def compute_chunk(base, size):
        # (size, 128) per feature -> full-vreg VPU/EUP work.
        rows = [xt_ref[k, pl.ds(base, size), :] for k in range(D_IN)]

        # Layer 1: 8 -> 6, sigmoid.
        h1 = []
        for j in range(D_H1):
            acc = b1[j] + rows[0] * w1[0][j]
            for k in range(1, D_IN):
                acc = acc + rows[k] * w1[k][j]
            h1.append(_sigmoid(acc))

        # Layer 2: 6 -> 4, sigmoid.
        h2 = []
        for j in range(D_H2):
            acc = b2[j] + h1[0] * w2[0][j]
            for k in range(1, D_H1):
                acc = acc + h1[k] * w2[k][j]
            h2.append(_sigmoid(acc))

        # Layer 3: 4 -> 1, sigmoid.  Lane-dense (size, 128) store.
        acc = b3 + h2[0] * w3[0]
        for k in range(1, D_H2):
            acc = acc + h2[k] * w3[k]
        o_ref[pl.ds(base, size), :] = _sigmoid(acc)

    ts = o_ref.shape[0]
    CS = 8                                  # 8 sublanes = one f32 vreg per intermediate
    n_full, rem = ts // CS, ts % CS

    if n_full > 0:
        def body(c, carry):
            compute_chunk(pl.multiple_of(c * CS, CS), CS)
            return carry
        lax.fori_loop(0, n_full, body, 0, unroll=4 if n_full >= 4 else True)
    if rem > 0:
        compute_chunk(n_full * CS, rem)     # static tail (only for tiny batches)


def mlp_forward(x, packed_params, *, ts_max=512):
    """x: (B, 8) f32, packed_params: f32[87].  Returns (B, 1) f32.

    ts_max is the max sublane tile (512 -> 64K rows / 2 MiB input block per grid step).
    """
    B = x.shape[0]
    bp = ((B + LANES - 1) // LANES) * LANES     # lane-pad batch to a multiple of 128
    S = bp // LANES

    # Feature-major layout (8, S, 128).  Under jit the transpose + lane-pad + reshape
    # fuse into a single copy; callers that already hold feature-major data can pass
    # it straight through.
    x_t = jnp.transpose(x)                      # (8, B)
    if bp != B:
        x_t = jnp.pad(x_t, ((0, 0), (0, bp - B)))
    x3 = x_t.reshape(D_IN, S, LANES)

    if S <= 8:
        tile_s = S                              # full-array sublane block (legal for small B)
    else:
        half = ((pl.cdiv(S, 2) + 7) // 8) * 8   # >=2 grid steps so v7x megacore can shard
        tile_s = min(ts_max, half)              # multiple of 8
    n_blocks = pl.cdiv(S, tile_s)               # ragged last block handled by Pallas

    out = pl.pallas_call(
        _mlp_kernel,
        out_shape=jax.ShapeDtypeStruct((S, LANES), jnp.float32),
        grid=(n_blocks,),
        in_specs=[
            # One packed parameter buffer in SMEM (scalars), no per-layer DMAs.
            pl.BlockSpec(memory_space=pltpu.MemorySpace.SMEM),
            pl.BlockSpec((D_IN, tile_s, LANES), lambda i: (0, i, 0)),
        ],
        out_specs=pl.BlockSpec((tile_s, LANES), lambda i: (i, 0)),
        compiler_params=pltpu.CompilerParams(dimension_semantics=("parallel",)),
    )(packed_params, x3)

    return out.reshape(bp)[:B].reshape(B, 1)


def init_params(key):
    # Deterministic init mimicking torch.nn.Linear's U(-1/sqrt(fan_in), 1/sqrt(fan_in)).
    dims = [(D_IN, D_H1), (D_H1, D_H2), (D_H2, D_OUT)]
    params = []
    for i, (fin, fout) in enumerate(dims):
        kw, kb = jax.random.split(jax.random.fold_in(key, i))
        bound = 1.0 / jnp.sqrt(jnp.float32(fin))
        w = jax.random.uniform(kw, (fin, fout), jnp.float32, -bound, bound)
        b = jax.random.uniform(kb, (fout,), jnp.float32, -bound, bound)
        params.extend([w, b])
    return tuple(params)


def pack_params(params):
    w1, b1, w2, b2, w3, b3 = params
    packed = jnp.concatenate([
        w1.reshape(-1), b1.reshape(-1),
        w2.reshape(-1), b2.reshape(-1),
        w3.reshape(-1), b3.reshape(-1),
    ]).astype(jnp.float32)
    assert packed.shape == (_N_PARAMS,)
    return packed


def reference_forward(x, params):
    w1, b1, w2, b2, w3, b3 = params
    h = jax.nn.sigmoid(x @ w1 + b1)
    h = jax.nn.sigmoid(h @ w2 + b2)
    return jax.nn.sigmoid(h @ w3 + b3)


if __name__ == "__main__":
    key = jax.random.PRNGKey(0)
    kx, kp = jax.random.split(key)
    params = init_params(kp)
    packed = pack_params(params)

    fwd = jax.jit(mlp_forward)

    # Small batch: single grid point, sub-8-sublane tail path.
    B = 8
    x = jax.random.normal(kx, (B, D_IN), jnp.float32)
    out = jax.block_until_ready(fwd(x, packed))
    ref = reference_forward(x, params)
    assert out.shape == (B, 1)
    assert jnp.allclose(out, ref, atol=1e-5, rtol=1e-5)

    # Larger (non-multiple-of-128) batch: exercises the lane pad, >=2 grid steps
    # (megacore path), the strip-mined fori_loop, and the ragged last block.
    B2 = 3000
    x2 = jax.random.normal(jax.random.fold_in(kx, 1), (B2, D_IN), jnp.float32)
    out2 = jax.block_until_ready(fwd(x2, packed))
    ref2 = reference_forward(x2, params)
    assert out2.shape == (B2, 1)
    assert jnp.allclose(out2, ref2, atol=1e-5, rtol=1e-5)

    print("KERNEL_OK")
</pallas_src>

<mosaic_0001>
module attributes {stable_mosaic.version = 11 : i64} {
  func.func @_mlp_kernel(%arg0: i32, %arg1: memref<87xf32, #tpu.memory_space<smem>>, %arg2: memref<8x1x128xf32, #tpu.memory_space<vmem>>, %arg3: memref<1x128xf32, #tpu.memory_space<vmem>>) attributes {dimension_semantics = [#tpu.dimension_semantics<parallel>], iteration_bounds = array<i64: 1>, scalar_prefetch = 0 : i64, scratch_operands = 0 : i64, tpu.core_type = #tpu.core_type<tc>, window_params = [{transform_indices = @transform_0, window_bounds = array<i64: 87>}, {transform_indices = @transform_1, window_bounds = array<i64: 8, 1, 128>}, {transform_indices = @transform_2, window_bounds = array<i64: 1, 128>}]} {
    %c0 = arith.constant 0 : index
    %0 = memref.load %arg1[%c0] : memref<87xf32, #tpu.memory_space<smem>>
    %c1 = arith.constant 1 : index
    %1 = memref.load %arg1[%c1] : memref<87xf32, #tpu.memory_space<smem>>
    %c2 = arith.constant 2 : index
    %2 = memref.load %arg1[%c2] : memref<87xf32, #tpu.memory_space<smem>>
    %c3 = arith.constant 3 : index
    %3 = memref.load %arg1[%c3] : memref<87xf32, #tpu.memory_space<smem>>
    %c4 = arith.constant 4 : index
    %4 = memref.load %arg1[%c4] : memref<87xf32, #tpu.memory_space<smem>>
    %c5 = arith.constant 5 : index
    %5 = memref.load %arg1[%c5] : memref<87xf32, #tpu.memory_space<smem>>
    %c6 = arith.constant 6 : index
    %6 = memref.load %arg1[%c6] : memref<87xf32, #tpu.memory_space<smem>>
    %c7 = arith.constant 7 : index
    %7 = memref.load %arg1[%c7] : memref<87xf32, #tpu.memory_space<smem>>
    %c8 = arith.constant 8 : index
    %8 = memref.load %arg1[%c8] : memref<87xf32, #tpu.memory_space<smem>>
    %c9 = arith.constant 9 : index
    %9 = memref.load %arg1[%c9] : memref<87xf32, #tpu.memory_space<smem>>
    %c10 = arith.constant 10 : index
    %10 = memref.load %arg1[%c10] : memref<87xf32, #tpu.memory_space<smem>>
    %c11 = arith.constant 11 : index
    %11 = memref.load %arg1[%c11] : memref<87xf32, #tpu.memory_space<smem>>
    %c12 = arith.constant 12 : index
    %12 = memref.load %arg1[%c12] : memref<87xf32, #tpu.memory_space<smem>>
    %c13 = arith.constant 13 : index
    %13 = memref.load %arg1[%c13] : memref<87xf32, #tpu.memory_space<smem>>
    %c14 = arith.constant 14 : index
    %14 = memref.load %arg1[%c14] : memref<87xf32, #tpu.memory_space<smem>>
    %c15 = arith.constant 15 : index
    %15 = memref.load %arg1[%c15] : memref<87xf32, #tpu.memory_space<smem>>
    %c16 = arith.constant 16 : index
    %16 = memref.load %arg1[%c16] : memref<87xf32, #tpu.memory_space<smem>>
    %c17 = arith.constant 17 : index
    %17 = memref.load %arg1[%c17] : memref<87xf32, #tpu.memory_space<smem>>
    %c18 = arith.constant 18 : index
    %18 = memref.load %arg1[%c18] : memref<87xf32, #tpu.memory_space<smem>>
    %c19 = arith.constant 19 : index
    %19 = memref.load %arg1[%c19] : memref<87xf32, #tpu.memory_space<smem>>
    %c20 = arith.constant 20 : index
    %20 = memref.load %arg1[%c20] : memref<87xf32, #tpu.memory_space<smem>>
    %c21 = arith.constant 21 : index
    %21 = memref.load %arg1[%c21] : memref<87xf32, #tpu.memory_space<smem>>
    %c22 = arith.constant 22 : index
    %22 = memref.load %arg1[%c22] : memref<87xf32, #tpu.memory_space<smem>>
    %c23 = arith.constant 23 : index
    %23 = memref.load %arg1[%c23] : memref<87xf32, #tpu.memory_space<smem>>
    %c24 = arith.constant 24 : index
    %24 = memref.load %arg1[%c24] : memref<87xf32, #tpu.memory_space<smem>>
    %c25 = arith.constant 25 : index
    %25 = memref.load %arg1[%c25] : memref<87xf32, #tpu.memory_space<smem>>
    %c26 = arith.constant 26 : index
    %26 = memref.load %arg1[%c26] : memref<87xf32, #tpu.memory_space<smem>>
    %c27 = arith.constant 27 : index
    %27 = memref.load %arg1[%c27] : memref<87xf32, #tpu.memory_space<smem>>
    %c28 = arith.constant 28 : index
    %28 = memref.load %arg1[%c28] : memref<87xf32, #tpu.memory_space<smem>>
    %c29 = arith.constant 29 : index
    %29 = memref.load %arg1[%c29] : memref<87xf32, #tpu.memory_space<smem>>
    %c30 = arith.constant 30 : index
    %30 = memref.load %arg1[%c30] : memref<87xf32, #tpu.memory_space<smem>>
    %c31 = arith.constant 31 : index
    %31 = memref.load %arg1[%c31] : memref<87xf32, #tpu.memory_space<smem>>
    %c32 = arith.constant 32 : index
    %32 = memref.load %arg1[%c32] : memref<87xf32, #tpu.memory_space<smem>>
    %c33 = arith.constant 33 : index
    %33 = memref.load %arg1[%c33] : memref<87xf32, #tpu.memory_space<smem>>
    %c34 = arith.constant 34 : index
    %34 = memref.load %arg1[%c34] : memref<87xf32, #tpu.memory_space<smem>>
    %c35 = arith.constant 35 : index
    %35 = memref.load %arg1[%c35] : memref<87xf32, #tpu.memory_space<smem>>
    %c36 = arith.constant 36 : index
    %36 = memref.load %arg1[%c36] : memref<87xf32, #tpu.memory_space<smem>>
    %c37 = arith.constant 37 : index
    %37 = memref.load %arg1[%c37] : memref<87xf32, #tpu.memory_space<smem>>
    %c38 = arith.constant 38 : index
    %38 = memref.load %arg1[%c38] : memref<87xf32, #tpu.memory_space<smem>>
    %c39 = arith.constant 39 : index
    %39 = memref.load %arg1[%c39] : memref<87xf32, #tpu.memory_space<smem>>
    %c40 = arith.constant 40 : index
    %40 = memref.load %arg1[%c40] : memref<87xf32, #tpu.memory_space<smem>>
    %c41 = arith.constant 41 : index
    %41 = memref.load %arg1[%c41] : memref<87xf32, #tpu.memory_space<smem>>
    %c42 = arith.constant 42 : index
    %42 = memref.load %arg1[%c42] : memref<87xf32, #tpu.memory_space<smem>>
    %c43 = arith.constant 43 : index
    %43 = memref.load %arg1[%c43] : memref<87xf32, #tpu.memory_space<smem>>
    %c44 = arith.constant 44 : index
    %44 = memref.load %arg1[%c44] : memref<87xf32, #tpu.memory_space<smem>>
    %c45 = arith.constant 45 : index
    %45 = memref.load %arg1[%c45] : memref<87xf32, #tpu.memory_space<smem>>
    %c46 = arith.constant 46 : index
    %46 = memref.load %arg1[%c46] : memref<87xf32, #tpu.memory_space<smem>>
    %c47 = arith.constant 47 : index
    %47 = memref.load %arg1[%c47] : memref<87xf32, #tpu.memory_space<smem>>
    %c48 = arith.constant 48 : index
    %48 = memref.load %arg1[%c48] : memref<87xf32, #tpu.memory_space<smem>>
    %c49 = arith.constant 49 : index
    %49 = memref.load %arg1[%c49] : memref<87xf32, #tpu.memory_space<smem>>
    %c50 = arith.constant 50 : index
    %50 = memref.load %arg1[%c50] : memref<87xf32, #tpu.memory_space<smem>>
    %c51 = arith.constant 51 : index
    %51 = memref.load %arg1[%c51] : memref<87xf32, #tpu.memory_space<smem>>
    %c52 = arith.constant 52 : index
    %52 = memref.load %arg1[%c52] : memref<87xf32, #tpu.memory_space<smem>>
    %c53 = arith.constant 53 : index
    %53 = memref.load %arg1[%c53] : memref<87xf32, #tpu.memory_space<smem>>
    %c54 = arith.constant 54 : index
    %54 = memref.load %arg1[%c54] : memref<87xf32, #tpu.memory_space<smem>>
    %c55 = arith.constant 55 : index
    %55 = memref.load %arg1[%c55] : memref<87xf32, #tpu.memory_space<smem>>
    %c56 = arith.constant 56 : index
    %56 = memref.load %arg1[%c56] : memref<87xf32, #tpu.memory_space<smem>>
    %c57 = arith.constant 57 : index
    %57 = memref.load %arg1[%c57] : memref<87xf32, #tpu.memory_space<smem>>
    %c58 = arith.constant 58 : index
    %58 = memref.load %arg1[%c58] : memref<87xf32, #tpu.memory_space<smem>>
    %c59 = arith.constant 59 : index
    %59 = memref.load %arg1[%c59] : memref<87xf32, #tpu.memory_space<smem>>
    %c60 = arith.constant 60 : index
    %60 = memref.load %arg1[%c60] : memref<87xf32, #tpu.memory_space<smem>>
    %c61 = arith.constant 61 : index
    %61 = memref.load %arg1[%c61] : memref<87xf32, #tpu.memory_space<smem>>
    %c62 = arith.constant 62 : index
    %62 = memref.load %arg1[%c62] : memref<87xf32, #tpu.memory_space<smem>>
    %c63 = arith.constant 63 : index
    %63 = memref.load %arg1[%c63] : memref<87xf32, #tpu.memory_space<smem>>
    %c64 = arith.constant 64 : index
    %64 = memref.load %arg1[%c64] : memref<87xf32, #tpu.memory_space<smem>>
    %c65 = arith.constant 65 : index
    %65 = memref.load %arg1[%c65] : memref<87xf32, #tpu.memory_space<smem>>
    %c66 = arith.constant 66 : index
    %66 = memref.load %arg1[%c66] : memref<87xf32, #tpu.memory_space<smem>>
    %c67 = arith.constant 67 : index
    %67 = memref.load %arg1[%c67] : memref<87xf32, #tpu.memory_space<smem>>
    %c68 = arith.constant 68 : index
    %68 = memref.load %arg1[%c68] : memref<87xf32, #tpu.memory_space<smem>>
    %c69 = arith.constant 69 : index
    %69 = memref.load %arg1[%c69] : memref<87xf32, #tpu.memory_space<smem>>
    %c70 = arith.constant 70 : index
    %70 = memref.load %arg1[%c70] : memref<87xf32, #tpu.memory_space<smem>>
    %c71 = arith.constant 71 : index
    %71 = memref.load %arg1[%c71] : memref<87xf32, #tpu.memory_space<smem>>
    %c72 = arith.constant 72 : index
    %72 = memref.load %arg1[%c72] : memref<87xf32, #tpu.memory_space<smem>>
    %c73 = arith.constant 73 : index
    %73 = memref.load %arg1[%c73] : memref<87xf32, #tpu.memory_space<smem>>
    %c74 = arith.constant 74 : index
    %74 = memref.load %arg1[%c74] : memref<87xf32, #tpu.memory_space<smem>>
    %c75 = arith.constant 75 : index
    %75 = memref.load %arg1[%c75] : memref<87xf32, #tpu.memory_space<smem>>
    %c76 = arith.constant 76 : index
    %76 = memref.load %arg1[%c76] : memref<87xf32, #tpu.memory_space<smem>>
    %c77 = arith.constant 77 : index
    %77 = memref.load %arg1[%c77] : memref<87xf32, #tpu.memory_space<smem>>
    %c78 = arith.constant 78 : index
    %78 = memref.load %arg1[%c78] : memref<87xf32, #tpu.memory_space<smem>>
    %c79 = arith.constant 79 : index
    %79 = memref.load %arg1[%c79] : memref<87xf32, #tpu.memory_space<smem>>
    %c80 = arith.constant 80 : index
    %80 = memref.load %arg1[%c80] : memref<87xf32, #tpu.memory_space<smem>>
    %c81 = arith.constant 81 : index
    %81 = memref.load %arg1[%c81] : memref<87xf32, #tpu.memory_space<smem>>
    %c82 = arith.constant 82 : index
    %82 = memref.load %arg1[%c82] : memref<87xf32, #tpu.memory_space<smem>>
    %c83 = arith.constant 83 : index
    %83 = memref.load %arg1[%c83] : memref<87xf32, #tpu.memory_space<smem>>
    %c84 = arith.constant 84 : index
    %84 = memref.load %arg1[%c84] : memref<87xf32, #tpu.memory_space<smem>>
    %c85 = arith.constant 85 : index
    %85 = memref.load %arg1[%c85] : memref<87xf32, #tpu.memory_space<smem>>
    %c86 = arith.constant 86 : index
    %86 = memref.load %arg1[%c86] : memref<87xf32, #tpu.memory_space<smem>>
    %c0_0 = arith.constant 0 : index
    %c0_1 = arith.constant 0 : index
    %c0_2 = arith.constant 0 : index
    %87 = vector.load %arg2[%c0_0, %c0_1, %c0_2] : memref<8x1x128xf32, #tpu.memory_space<vmem>>, vector<1x1x128xf32>
    %88 = vector.shape_cast %87 : vector<1x1x128xf32> to vector<1x128xf32>
    %c1_3 = arith.constant 1 : index
    %c0_4 = arith.constant 0 : index
    %c0_5 = arith.constant 0 : index
    %89 = vector.load %arg2[%c1_3, %c0_4, %c0_5] : memref<8x1x128xf32, #tpu.memory_space<vmem>>, vector<1x1x128xf32>
    %90 = vector.shape_cast %89 : vector<1x1x128xf32> to vector<1x128xf32>
    %c2_6 = arith.constant 2 : index
    %c0_7 = arith.constant 0 : index
    %c0_8 = arith.constant 0 : index
    %91 = vector.load %arg2[%c2_6, %c0_7, %c0_8] : memref<8x1x128xf32, #tpu.memory_space<vmem>>, vector<1x1x128xf32>
    %92 = vector.shape_cast %91 : vector<1x1x128xf32> to vector<1x128xf32>
    %c3_9 = arith.constant 3 : index
    %c0_10 = arith.constant 0 : index
    %c0_11 = arith.constant 0 : index
    %93 = vector.load %arg2[%c3_9, %c0_10, %c0_11] : memref<8x1x128xf32, #tpu.memory_space<vmem>>, vector<1x1x128xf32>
    %94 = vector.shape_cast %93 : vector<1x1x128xf32> to vector<1x128xf32>
    %c4_12 = arith.constant 4 : index
    %c0_13 = arith.constant 0 : index
    %c0_14 = arith.constant 0 : index
    %95 = vector.load %arg2[%c4_12, %c0_13, %c0_14] : memref<8x1x128xf32, #tpu.memory_space<vmem>>, vector<1x1x128xf32>
    %96 = vector.shape_cast %95 : vector<1x1x128xf32> to vector<1x128xf32>
    %c5_15 = arith.constant 5 : index
    %c0_16 = arith.constant 0 : index
    %c0_17 = arith.constant 0 : index
    %97 = vector.load %arg2[%c5_15, %c0_16, %c0_17] : memref<8x1x128xf32, #tpu.memory_space<vmem>>, vector<1x1x128xf32>
    %98 = vector.shape_cast %97 : vector<1x1x128xf32> to vector<1x128xf32>
    %c6_18 = arith.constant 6 : index
    %c0_19 = arith.constant 0 : index
    %c0_20 = arith.constant 0 : index
    %99 = vector.load %arg2[%c6_18, %c0_19, %c0_20] : memref<8x1x128xf32, #tpu.memory_space<vmem>>, vector<1x1x128xf32>
    %100 = vector.shape_cast %99 : vector<1x1x128xf32> to vector<1x128xf32>
    %c7_21 = arith.constant 7 : index
    %c0_22 = arith.constant 0 : index
    %c0_23 = arith.constant 0 : index
    %101 = vector.load %arg2[%c7_21, %c0_22, %c0_23] : memref<8x1x128xf32, #tpu.memory_space<vmem>>, vector<1x1x128xf32>
    %102 = vector.shape_cast %101 : vector<1x1x128xf32> to vector<1x128xf32>
    %103 = vector.broadcast %0 : f32 to vector<1x128xf32>
    %104 = arith.mulf %88, %103 : vector<1x128xf32>
    %105 = vector.broadcast %48 : f32 to vector<1x128xf32>
    %106 = arith.addf %105, %104 : vector<1x128xf32>
    %107 = vector.broadcast %6 : f32 to vector<1x128xf32>
    %108 = arith.mulf %90, %107 : vector<1x128xf32>
    %109 = arith.addf %106, %108 : vector<1x128xf32>
    %110 = vector.broadcast %12 : f32 to vector<1x128xf32>
    %111 = arith.mulf %92, %110 : vector<1x128xf32>
    %112 = arith.addf %109, %111 : vector<1x128xf32>
    %113 = vector.broadcast %18 : f32 to vector<1x128xf32>
    %114 = arith.mulf %94, %113 : vector<1x128xf32>
    %115 = arith.addf %112, %114 : vector<1x128xf32>
    %116 = vector.broadcast %24 : f32 to vector<1x128xf32>
    %117 = arith.mulf %96, %116 : vector<1x128xf32>
    %118 = arith.addf %115, %117 : vector<1x128xf32>
    %119 = vector.broadcast %30 : f32 to vector<1x128xf32>
    %120 = arith.mulf %98, %119 : vector<1x128xf32>
    %121 = arith.addf %118, %120 : vector<1x128xf32>
    %122 = vector.broadcast %36 : f32 to vector<1x128xf32>
    %123 = arith.mulf %100, %122 : vector<1x128xf32>
    %124 = arith.addf %121, %123 : vector<1x128xf32>
    %125 = vector.broadcast %42 : f32 to vector<1x128xf32>
    %126 = arith.mulf %102, %125 : vector<1x128xf32>
    %127 = arith.addf %124, %126 : vector<1x128xf32>
    %cst = arith.constant 5.000000e-01 : f32
    %128 = vector.broadcast %cst : f32 to vector<1x128xf32>
    %129 = arith.mulf %128, %127 : vector<1x128xf32>
    %130 = math.tanh %129 : vector<1x128xf32>
    %cst_24 = arith.constant 5.000000e-01 : f32
    %131 = vector.broadcast %cst_24 : f32 to vector<1x128xf32>
    %132 = arith.mulf %131, %130 : vector<1x128xf32>
    %cst_25 = arith.constant 5.000000e-01 : f32
    %133 = vector.broadcast %cst_25 : f32 to vector<1x128xf32>
    %134 = arith.addf %132, %133 : vector<1x128xf32>
    %135 = vector.broadcast %1 : f32 to vector<1x128xf32>
    %136 = arith.mulf %88, %135 : vector<1x128xf32>
    %137 = vector.broadcast %49 : f32 to vector<1x128xf32>
    %138 = arith.addf %137, %136 : vector<1x128xf32>
    %139 = vector.broadcast %7 : f32 to vector<1x128xf32>
    %140 = arith.mulf %90, %139 : vector<1x128xf32>
    %141 = arith.addf %138, %140 : vector<1x128xf32>
    %142 = vector.broadcast %13 : f32 to vector<1x128xf32>
    %143 = arith.mulf %92, %142 : vector<1x128xf32>
    %144 = arith.addf %141, %143 : vector<1x128xf32>
    %145 = vector.broadcast %19 : f32 to vector<1x128xf32>
    %146 = arith.mulf %94, %145 : vector<1x128xf32>
    %147 = arith.addf %144, %146 : vector<1x128xf32>
    %148 = vector.broadcast %25 : f32 to vector<1x128xf32>
    %149 = arith.mulf %96, %148 : vector<1x128xf32>
    %150 = arith.addf %147, %149 : vector<1x128xf32>
    %151 = vector.broadcast %31 : f32 to vector<1x128xf32>
    %152 = arith.mulf %98, %151 : vector<1x128xf32>
    %153 = arith.addf %150, %152 : vector<1x128xf32>
    %154 = vector.broadcast %37 : f32 to vector<1x128xf32>
    %155 = arith.mulf %100, %154 : vector<1x128xf32>
    %156 = arith.addf %153, %155 : vector<1x128xf32>
    %157 = vector.broadcast %43 : f32 to vector<1x128xf32>
    %158 = arith.mulf %102, %157 : vector<1x128xf32>
    %159 = arith.addf %156, %158 : vector<1x128xf32>
    %cst_26 = arith.constant 5.000000e-01 : f32
    %160 = vector.broadcast %cst_26 : f32 to vector<1x128xf32>
    %161 = arith.mulf %160, %159 : vector<1x128xf32>
    %162 = math.tanh %161 : vector<1x128xf32>
    %cst_27 = arith.constant 5.000000e-01 : f32
    %163 = vector.broadcast %cst_27 : f32 to vector<1x128xf32>
    %164 = arith.mulf %163, %162 : vector<1x128xf32>
    %cst_28 = arith.constant 5.000000e-01 : f32
    %165 = vector.broadcast %cst_28 : f32 to vector<1x128xf32>
    %166 = arith.addf %164, %165 : vector<1x128xf32>
    %167 = vector.broadcast %2 : f32 to vector<1x128xf32>
    %168 = arith.mulf %88, %167 : vector<1x128xf32>
    %169 = vector.broadcast %50 : f32 to vector<1x128xf32>
    %170 = arith.addf %169, %168 : vector<1x128xf32>
    %171 = vector.broadcast %8 : f32 to vector<1x128xf32>
    %172 = arith.mulf %90, %171 : vector<1x128xf32>
    %173 = arith.addf %170, %172 : vector<1x128xf32>
    %174 = vector.broadcast %14 : f32 to vector<1x128xf32>
    %175 = arith.mulf %92, %174 : vector<1x128xf32>
    %176 = arith.addf %173, %175 : vector<1x128xf32>
    %177 = vector.broadcast %20 : f32 to vector<1x128xf32>
    %178 = arith.mulf %94, %177 : vector<1x128xf32>
    %179 = arith.addf %176, %178 : vector<1x128xf32>
    %180 = vector.broadcast %26 : f32 to vector<1x128xf32>
    %181 = arith.mulf %96, %180 : vector<1x128xf32>
    %182 = arith.addf %179, %181 : vector<1x128xf32>
    %183 = vector.broadcast %32 : f32 to vector<1x128xf32>
    %184 = arith.mulf %98, %183 : vector<1x128xf32>
    %185 = arith.addf %182, %184 : vector<1x128xf32>
    %186 = vector.broadcast %38 : f32 to vector<1x128xf32>
    %187 = arith.mulf %100, %186 : vector<1x128xf32>
    %188 = arith.addf %185, %187 : vector<1x128xf32>
    %189 = vector.broadcast %44 : f32 to vector<1x128xf32>
    %190 = arith.mulf %102, %189 : vector<1x128xf32>
    %191 = arith.addf %188, %190 : vector<1x128xf32>
    %cst_29 = arith.constant 5.000000e-01 : f32
    %192 = vector.broadcast %cst_29 : f32 to vector<1x128xf32>
    %193 = arith.mulf %192, %191 : vector<1x128xf32>
    %194 = math.tanh %193 : vector<1x128xf32>
    %cst_30 = arith.constant 5.000000e-01 : f32
    %195 = vector.broadcast %cst_30 : f32 to vector<1x128xf32>
    %196 = arith.mulf %195, %194 : vector<1x128xf32>
    %cst_31 = arith.constant 5.000000e-01 : f32
    %197 = vector.broadcast %cst_31 : f32 to vector<1x128xf32>
    %198 = arith.addf %196, %197 : vector<1x128xf32>
    %199 = vector.broadcast %3 : f32 to vector<1x128xf32>
    %200 = arith.mulf %88, %199 : vector<1x128xf32>
    %201 = vector.broadcast %51 : f32 to vector<1x128xf32>
    %202 = arith.addf %201, %200 : vector<1x128xf32>
    %203 = vector.broadcast %9 : f32 to vector<1x128xf32>
    %204 = arith.mulf %90, %203 : vector<1x128xf32>
    %205 = arith.addf %202, %204 : vector<1x128xf32>
    %206 = vector.broadcast %15 : f32 to vector<1x128xf32>
    %207 = arith.mulf %92, %206 : vector<1x128xf32>
    %208 = arith.addf %205, %207 : vector<1x128xf32>
    %209 = vector.broadcast %21 : f32 to vector<1x128xf32>
    %210 = arith.mulf %94, %209 : vector<1x128xf32>
    %211 = arith.addf %208, %210 : vector<1x128xf32>
    %212 = vector.broadcast %27 : f32 to vector<1x128xf32>
    %213 = arith.mulf %96, %212 : vector<1x128xf32>
    %214 = arith.addf %211, %213 : vector<1x128xf32>
    %215 = vector.broadcast %33 : f32 to vector<1x128xf32>
    %216 = arith.mulf %98, %215 : vector<1x128xf32>
    %217 = arith.addf %214, %216 : vector<1x128xf32>
    %218 = vector.broadcast %39 : f32 to vector<1x128xf32>
    %219 = arith.mulf %100, %218 : vector<1x128xf32>
    %220 = arith.addf %217, %219 : vector<1x128xf32>
    %221 = vector.broadcast %45 : f32 to vector<1x128xf32>
    %222 = arith.mulf %102, %221 : vector<1x128xf32>
    %223 = arith.addf %220, %222 : vector<1x128xf32>
    %cst_32 = arith.constant 5.000000e-01 : f32
    %224 = vector.broadcast %cst_32 : f32 to vector<1x128xf32>
    %225 = arith.mulf %224, %223 : vector<1x128xf32>
    %226 = math.tanh %225 : vector<1x128xf32>
    %cst_33 = arith.constant 5.000000e-01 : f32
    %227 = vector.broadcast %cst_33 : f32 to vector<1x128xf32>
    %228 = arith.mulf %227, %226 : vector<1x128xf32>
    %cst_34 = arith.constant 5.000000e-01 : f32
    %229 = vector.broadcast %cst_34 : f32 to vector<1x128xf32>
    %230 = arith.addf %228, %229 : vector<1x128xf32>
    %231 = vector.broadcast %4 : f32 to vector<1x128xf32>
    %232 = arith.mulf %88, %231 : vector<1x128xf32>
    %233 = vector.broadcast %52 : f32 to vector<1x128xf32>
    %234 = arith.addf %233, %232 : vector<1x128xf32>
    %235 = vector.broadcast %10 : f32 to vector<1x128xf32>
    %236 = arith.mulf %90, %235 : vector<1x128xf32>
    %237 = arith.addf %234, %236 : vector<1x128xf32>
    %238 = vector.broadcast %16 : f32 to vector<1x128xf32>
    %239 = arith.mulf %92, %238 : vector<1x128xf32>
    %240 = arith.addf %237, %239 : vector<1x128xf32>
    %241 = vector.broadcast %22 : f32 to vector<1x128xf32>
    %242 = arith.mulf %94, %241 : vector<1x128xf32>
    %243 = arith.addf %240, %242 : vector<1x128xf32>
    %244 = vector.broadcast %28 : f32 to vector<1x128xf32>
    %245 = arith.mulf %96, %244 : vector<1x128xf32>
    %246 = arith.addf %243, %245 : vector<1x128xf32>
    %247 = vector.broadcast %34 : f32 to vector<1x128xf32>
    %248 = arith.mulf %98, %247 : vector<1x128xf32>
    %249 = arith.addf %246, %248 : vector<1x128xf32>
    %250 = vector.broadcast %40 : f32 to vector<1x128xf32>
    %251 = arith.mulf %100, %250 : vector<1x128xf32>
    %252 = arith.addf %249, %251 : vector<1x128xf32>
    %253 = vector.broadcast %46 : f32 to vector<1x128xf32>
    %254 = arith.mulf %102, %253 : vector<1x128xf32>
    %255 = arith.addf %252, %254 : vector<1x128xf32>
    %cst_35 = arith.constant 5.000000e-01 : f32
    %256 = vector.broadcast %cst_35 : f32 to vector<1x128xf32>
    %257 = arith.mulf %256, %255 : vector<1x128xf32>
    %258 = math.tanh %257 : vector<1x128xf32>
    %cst_36 = arith.constant 5.000000e-01 : f32
    %259 = vector.broadcast %cst_36 : f32 to vector<1x128xf32>
    %260 = arith.mulf %259, %258 : vector<1x128xf32>
    %cst_37 = arith.constant 5.000000e-01 : f32
    %261 = vector.broadcast %cst_37 : f32 to vector<1x128xf32>
    %262 = arith.addf %260, %261 : vector<1x128xf32>
    %263 = vector.broadcast %5 : f32 to vector<1x128xf32>
    %264 = arith.mulf %88, %263 : vector<1x128xf32>
    %265 = vector.broadcast %53 : f32 to vector<1x128xf32>
    %266 = arith.addf %265, %264 : vector<1x128xf32>
    %267 = vector.broadcast %11 : f32 to vector<1x128xf32>
    %268 = arith.mulf %90, %267 : vector<1x128xf32>
    %269 = arith.addf %266, %268 : vector<1x128xf32>
    %270 = vector.broadcast %17 : f32 to vector<1x128xf32>
    %271 = arith.mulf %92, %270 : vector<1x128xf32>
    %272 = arith.addf %269, %271 : vector<1x128xf32>
    %273 = vector.broadcast %23 : f32 to vector<1x128xf32>
    %274 = arith.mulf %94, %273 : vector<1x128xf32>
    %275 = arith.addf %272, %274 : vector<1x128xf32>
    %276 = vector.broadcast %29 : f32 to vector<1x128xf32>
    %277 = arith.mulf %96, %276 : vector<1x128xf32>
    %278 = arith.addf %275, %277 : vector<1x128xf32>
    %279 = vector.broadcast %35 : f32 to vector<1x128xf32>
    %280 = arith.mulf %98, %279 : vector<1x128xf32>
    %281 = arith.addf %278, %280 : vector<1x128xf32>
    %282 = vector.broadcast %41 : f32 to vector<1x128xf32>
    %283 = arith.mulf %100, %282 : vector<1x128xf32>
    %284 = arith.addf %281, %283 : vector<1x128xf32>
    %285 = vector.broadcast %47 : f32 to vector<1x128xf32>
    %286 = arith.mulf %102, %285 : vector<1x128xf32>
    %287 = arith.addf %284, %286 : vector<1x128xf32>
    %cst_38 = arith.constant 5.000000e-01 : f32
    %288 = vector.broadcast %cst_38 : f32 to vector<1x128xf32>
    %289 = arith.mulf %288, %287 : vector<1x128xf32>
    %290 = math.tanh %289 : vector<1x128xf32>
    %cst_39 = arith.constant 5.000000e-01 : f32
    %291 = vector.broadcast %cst_39 : f32 to vector<1x128xf32>
    %292 = arith.mulf %291, %290 : vector<1x128xf32>
    %cst_40 = arith.constant 5.000000e-01 : f32
    %293 = vector.broadcast %cst_40 : f32 to vector<1x128xf32>
    %294 = arith.addf %292, %293 : vector<1x128xf32>
    %295 = vector.broadcast %54 : f32 to vector<1x128xf32>
    %296 = arith.mulf %134, %295 : vector<1x128xf32>
    %297 = vector.broadcast %78 : f32 to vector<1x128xf32>
    %298 = arith.addf %297, %296 : vector<1x128xf32>
    %299 = vector.broadcast %58 : f32 to vector<1x128xf32>
    %300 = arith.mulf %166, %299 : vector<1x128xf32>
    %301 = arith.addf %298, %300 : vector<1x128xf32>
    %302 = vector.broadcast %62 : f32 to vector<1x128xf32>
    %303 = arith.mulf %198, %302 : vector<1x128xf32>
    %304 = arith.addf %301, %303 : vector<1x128xf32>
    %305 = vector.broadcast %66 : f32 to vector<1x128xf32>
    %306 = arith.mulf %230, %305 : vector<1x128xf32>
    %307 = arith.addf %304, %306 : vector<1x128xf32>
    %308 = vector.broadcast %70 : f32 to vector<1x128xf32>
    %309 = arith.mulf %262, %308 : vector<1x128xf32>
    %310 = arith.addf %307, %309 : vector<1x128xf32>
    %311 = vector.broadcast %74 : f32 to vector<1x128xf32>
    %312 = arith.mulf %294, %311 : vector<1x128xf32>
    %313 = arith.addf %310, %312 : vector<1x128xf32>
    %cst_41 = arith.constant 5.000000e-01 : f32
    %314 = vector.broadcast %cst_41 : f32 to vector<1x128xf32>
    %315 = arith.mulf %314, %313 : vector<1x128xf32>
    %316 = math.tanh %315 : vector<1x128xf32>
    %cst_42 = arith.constant 5.000000e-01 : f32
    %317 = vector.broadcast %cst_42 : f32 to vector<1x128xf32>
    %318 = arith.mulf %317, %316 : vector<1x128xf32>
    %cst_43 = arith.constant 5.000000e-01 : f32
    %319 = vector.broadcast %cst_43 : f32 to vector<1x128xf32>
    %320 = arith.addf %318, %319 : vector<1x128xf32>
    %321 = vector.broadcast %55 : f32 to vector<1x128xf32>
    %322 = arith.mulf %134, %321 : vector<1x128xf32>
    %323 = vector.broadcast %79 : f32 to vector<1x128xf32>
    %324 = arith.addf %323, %322 : vector<1x128xf32>
    %325 = vector.broadcast %59 : f32 to vector<1x128xf32>
    %326 = arith.mulf %166, %325 : vector<1x128xf32>
    %327 = arith.addf %324, %326 : vector<1x128xf32>
    %328 = vector.broadcast %63 : f32 to vector<1x128xf32>
    %329 = arith.mulf %198, %328 : vector<1x128xf32>
    %330 = arith.addf %327, %329 : vector<1x128xf32>
    %331 = vector.broadcast %67 : f32 to vector<1x128xf32>
    %332 = arith.mulf %230, %331 : vector<1x128xf32>
    %333 = arith.addf %330, %332 : vector<1x128xf32>
    %334 = vector.broadcast %71 : f32 to vector<1x128xf32>
    %335 = arith.mulf %262, %334 : vector<1x128xf32>
    %336 = arith.addf %333, %335 : vector<1x128xf32>
    %337 = vector.broadcast %75 : f32 to vector<1x128xf32>
    %338 = arith.mulf %294, %337 : vector<1x128xf32>
    %339 = arith.addf %336, %338 : vector<1x128xf32>
    %cst_44 = arith.constant 5.000000e-01 : f32
    %340 = vector.broadcast %cst_44 : f32 to vector<1x128xf32>
    %341 = arith.mulf %340, %339 : vector<1x128xf32>
    %342 = math.tanh %341 : vector<1x128xf32>
    %cst_45 = arith.constant 5.000000e-01 : f32
    %343 = vector.broadcast %cst_45 : f32 to vector<1x128xf32>
    %344 = arith.mulf %343, %342 : vector<1x128xf32>
    %cst_46 = arith.constant 5.000000e-01 : f32
    %345 = vector.broadcast %cst_46 : f32 to vector<1x128xf32>
    %346 = arith.addf %344, %345 : vector<1x128xf32>
    %347 = vector.broadcast %56 : f32 to vector<1x128xf32>
    %348 = arith.mulf %134, %347 : vector<1x128xf32>
    %349 = vector.broadcast %80 : f32 to vector<1x128xf32>
    %350 = arith.addf %349, %348 : vector<1x128xf32>
    %351 = vector.broadcast %60 : f32 to vector<1x128xf32>
    %352 = arith.mulf %166, %351 : vector<1x128xf32>
    %353 = arith.addf %350, %352 : vector<1x128xf32>
    %354 = vector.broadcast %64 : f32 to vector<1x128xf32>
    %355 = arith.mulf %198, %354 : vector<1x128xf32>
    %356 = arith.addf %353, %355 : vector<1x128xf32>
    %357 = vector.broadcast %68 : f32 to vector<1x128xf32>
    %358 = arith.mulf %230, %357 : vector<1x128xf32>
    %359 = arith.addf %356, %358 : vector<1x128xf32>
    %360 = vector.broadcast %72 : f32 to vector<1x128xf32>
    %361 = arith.mulf %262, %360 : vector<1x128xf32>
    %362 = arith.addf %359, %361 : vector<1x128xf32>
    %363 = vector.broadcast %76 : f32 to vector<1x128xf32>
    %364 = arith.mulf %294, %363 : vector<1x128xf32>
    %365 = arith.addf %362, %364 : vector<1x128xf32>
    %cst_47 = arith.constant 5.000000e-01 : f32
    %366 = vector.broadcast %cst_47 : f32 to vector<1x128xf32>
    %367 = arith.mulf %366, %365 : vector<1x128xf32>
    %368 = math.tanh %367 : vector<1x128xf32>
    %cst_48 = arith.constant 5.000000e-01 : f32
    %369 = vector.broadcast %cst_48 : f32 to vector<1x128xf32>
    %370 = arith.mulf %369, %368 : vector<1x128xf32>
    %cst_49 = arith.constant 5.000000e-01 : f32
    %371 = vector.broadcast %cst_49 : f32 to vector<1x128xf32>
    %372 = arith.addf %370, %371 : vector<1x128xf32>
    %373 = vector.broadcast %57 : f32 to vector<1x128xf32>
    %374 = arith.mulf %134, %373 : vector<1x128xf32>
    %375 = vector.broadcast %81 : f32 to vector<1x128xf32>
    %376 = arith.addf %375, %374 : vector<1x128xf32>
    %377 = vector.broadcast %61 : f32 to vector<1x128xf32>
    %378 = arith.mulf %166, %377 : vector<1x128xf32>
    %379 = arith.addf %376, %378 : vector<1x128xf32>
    %380 = vector.broadcast %65 : f32 to vector<1x128xf32>
    %381 = arith.mulf %198, %380 : vector<1x128xf32>
    %382 = arith.addf %379, %381 : vector<1x128xf32>
    %383 = vector.broadcast %69 : f32 to vector<1x128xf32>
    %384 = arith.mulf %230, %383 : vector<1x128xf32>
    %385 = arith.addf %382, %384 : vector<1x128xf32>
    %386 = vector.broadcast %73 : f32 to vector<1x128xf32>
    %387 = arith.mulf %262, %386 : vector<1x128xf32>
    %388 = arith.addf %385, %387 : vector<1x128xf32>
    %389 = vector.broadcast %77 : f32 to vector<1x128xf32>
    %390 = arith.mulf %294, %389 : vector<1x128xf32>
    %391 = arith.addf %388, %390 : vector<1x128xf32>
    %cst_50 = arith.constant 5.000000e-01 : f32
    %392 = vector.broadcast %cst_50 : f32 to vector<1x128xf32>
    %393 = arith.mulf %392, %391 : vector<1x128xf32>
    %394 = math.tanh %393 : vector<1x128xf32>
    %cst_51 = arith.constant 5.000000e-01 : f32
    %395 = vector.broadcast %cst_51 : f32 to vector<1x128xf32>
    %396 = arith.mulf %395, %394 : vector<1x128xf32>
    %cst_52 = arith.constant 5.000000e-01 : f32
    %397 = vector.broadcast %cst_52 : f32 to vector<1x128xf32>
    %398 = arith.addf %396, %397 : vector<1x128xf32>
    %399 = vector.broadcast %82 : f32 to vector<1x128xf32>
    %400 = arith.mulf %320, %399 : vector<1x128xf32>
    %401 = vector.broadcast %86 : f32 to vector<1x128xf32>
    %402 = arith.addf %401, %400 : vector<1x128xf32>
    %403 = vector.broadcast %83 : f32 to vector<1x128xf32>
    %404 = arith.mulf %346, %403 : vector<1x128xf32>
    %405 = arith.addf %402, %404 : vector<1x128xf32>
    %406 = vector.broadcast %84 : f32 to vector<1x128xf32>
    %407 = arith.mulf %372, %406 : vector<1x128xf32>
    %408 = arith.addf %405, %407 : vector<1x128xf32>
    %409 = vector.broadcast %85 : f32 to vector<1x128xf32>
    %410 = arith.mulf %398, %409 : vector<1x128xf32>
    %411 = arith.addf %408, %410 : vector<1x128xf32>
    %cst_53 = arith.constant 5.000000e-01 : f32
    %412 = vector.broadcast %cst_53 : f32 to vector<1x128xf32>
    %413 = arith.mulf %412, %411 : vector<1x128xf32>
    %414 = math.tanh %413 : vector<1x128xf32>
    %cst_54 = arith.constant 5.000000e-01 : f32
    %415 = vector.broadcast %cst_54 : f32 to vector<1x128xf32>
    %416 = arith.mulf %415, %414 : vector<1x128xf32>
    %cst_55 = arith.constant 5.000000e-01 : f32
    %417 = vector.broadcast %cst_55 : f32 to vector<1x128xf32>
    %418 = arith.addf %416, %417 : vector<1x128xf32>
    %c0_56 = arith.constant 0 : index
    %c0_57 = arith.constant 0 : index
    %419 = vector.load %arg3[%c0_56, %c0_57] : memref<1x128xf32, #tpu.memory_space<vmem>>, vector<1x128xf32>
    tpu.vector_store %arg3[%c0_56, %c0_57], %418 {strides = array<i32>} : memref<1x128xf32, #tpu.memory_space<vmem>>, vector<1x128xf32>,
    return
  }
  func.func @transform_0(%arg0: i32) -> i32 {
    %c0_i32 = arith.constant 0 : i32
    %c0_i32_0 = arith.constant 0 : i32
    return %c0_i32 : i32
  }
  func.func @transform_1(%arg0: i32) -> (i32, i32, i32) {
    %c0_i32 = arith.constant 0 : i32
    %c0_i32_0 = arith.constant 0 : i32
    %c0_i32_1 = arith.constant 0 : i32
    return %c0_i32, %arg0, %c0_i32_0 : i32, i32, i32
  }
  func.func @transform_2(%arg0: i32) -> (i32, i32) {
    %c0_i32 = arith.constant 0 : i32
    %c0_i32_0 = arith.constant 0 : i32
    return %arg0, %c0_i32 : i32, i32
  }
}

</mosaic_0001>

<llo_original>
// kernel: mlp_forward.1
$region0: #{mlp_forward.1}
  #allocation0 [shape = 'u32[]', space=smem, size = 0x4, offset = 0x4, fixed_abs, tag = 'smem constant byte address 0x4 - core index']
  #allocation1 [shape = 'u32[72,128]{1,0:T(1,128)}', space=vmem, size = 0x9000, scoped, tag = 'internal scratch']
  %s0 = inlined_call_operand.vmem [shape: f32[87], index: 0, kind: input, shape index: {}]
  %s1 = inlined_call_operand.vmem [shape: f32[8,1,128], index: 1, kind: input, shape index: {}]
  %s2 = inlined_call_operand.vmem [shape: f32[1,128], index: 2, kind: output, shape index: {}]
  %s3 = sld [smem:[#allocation0]]
  $region22: #{mlp_forward.1} parent=0
    _
  %s5 = ssub.s32 1, %s3
  %s6 = scalar_select 0, %s5, %s3
  $region1: #{mlp_forward.1} parent=0
    #allocation2 [shape = 'u8[512]{0}', space=smem, size = 0x200, scoped, tag = 'input window, operand 0, single buffered']
    #allocation3 [shape = 's32[1]{0}', space=sflag, size = 0x4, scoped, tag = 'scoped memory for mlp_forward.1']
    %7 = vsyncpa [#allocation3], 0
    // Predicated region
    $region2: #{mlp_forward.1} parent=1 // pred_check
      _
    $region3: #{mlp_forward.1} parent=1 // pred_check_branch
      %9 = sbr.rel (0) target = $region5
    $region4: #{mlp_forward.1} parent=1 // pred_region
      %11 = vsyncadd [#allocation3], 0
      %s13 = sshll.u32 %s0, 4
      %s14 = int_to_ptr.vmem [resolvable:$true] %s13
      %16 = dma.vmem_to_smem %s14, 16, [#allocation2], [#allocation3]
    $region5: #{mlp_forward.1} parent=1 // pred_fallthru
      _
    // Predicated region
    $region6: #{mlp_forward.1} parent=1 // pred_check
      _
    $region7: #{mlp_forward.1} parent=1 // pred_check_branch
      %18 = sbr.rel (0) target = $region9
    $region8: #{mlp_forward.1} parent=1 // pred_region
      _
    $region9: #{mlp_forward.1} parent=1 // pred_fallthru
      _
    // Predicated region
    $region10: #{mlp_forward.1} parent=1 // pred_check
      _
    $region11: #{mlp_forward.1} parent=1 // pred_check_branch
      %20 = sbr.rel (0) target = $region13
    $region12: #{mlp_forward.1} parent=1 // pred_region
      %22 = dma.done [#allocation3], 16
    $region13: #{mlp_forward.1} parent=1 // pred_fallthru
      _
    %23 = sfence
    %s24 = sld [smem:[#allocation2]]
    %s25 = sld [smem:[#allocation2 + $0x1]]
    %s26 = sld [smem:[#allocation2 + $0x2]]
    %s27 = sld [smem:[#allocation2 + $0x3]]
    %s28 = sld [smem:[#allocation2 + $0x4]]
    %s29 = sld [smem:[#allocation2 + $0x5]]
    %s30 = sld [smem:[#allocation2 + $0x6]]
    %s31 = sld [smem:[#allocation2 + $0x7]]
    %s32 = sld [smem:[#allocation2 + $0x8]]
    %s33 = sld [smem:[#allocation2 + $0x9]]
    %s34 = sld [smem:[#allocation2 + $0xa]]
    %s35 = sld [smem:[#allocation2 + $0xb]]
    %s36 = sld [smem:[#allocation2 + $0xc]]
    %s37 = sld [smem:[#allocation2 + $0xd]]
    %s38 = sld [smem:[#allocation2 + $0xe]]
    %s39 = sld [smem:[#allocation2 + $0xf]]
    %s40 = sld [smem:[#allocation2 + $0x10]]
    %s41 = sld [smem:[#allocation2 + $0x11]]
    %s42 = sld [smem:[#allocation2 + $0x12]]
    %s43 = sld [smem:[#allocation2 + $0x13]]
    %s44 = sld [smem:[#allocation2 + $0x14]]
    %s45 = sld [smem:[#allocation2 + $0x15]]
    %s46 = sld [smem:[#allocation2 + $0x16]]
    %s47 = sld [smem:[#allocation2 + $0x17]]
    %s48 = sld [smem:[#allocation2 + $0x18]]
    %s49 = sld [smem:[#allocation2 + $0x19]]
    %s50 = sld [smem:[#allocation2 + $0x1a]]
    %s51 = sld [smem:[#allocation2 + $0x1b]]
    %s52 = sld [smem:[#allocation2 + $0x1c]]
    %s53 = sld [smem:[#allocation2 + $0x1d]]
    %s54 = sld [smem:[#allocation2 + $0x1e]]
    %s55 = sld [smem:[#allocation2 + $0x1f]]
    %s56 = sld [smem:[#allocation2 + $0x20]]
    %s57 = sld [smem:[#allocation2 + $0x21]]
    %s58 = sld [smem:[#allocation2 + $0x22]]
    %s59 = sld [smem:[#allocation2 + $0x23]]
    %s60 = sld [smem:[#allocation2 + $0x24]]
    %s61 = sld [smem:[#allocation2 + $0x25]]
    %s62 = sld [smem:[#allocation2 + $0x26]]
    %s63 = sld [smem:[#allocation2 + $0x27]]
    %s64 = sld [smem:[#allocation2 + $0x28]]
    %s65 = sld [smem:[#allocation2 + $0x29]]
    %s66 = sld [smem:[#allocation2 + $0x2a]]
    %s67 = sld [smem:[#allocation2 + $0x2b]]
    %s68 = sld [smem:[#allocation2 + $0x2c]]
    %s69 = sld [smem:[#allocation2 + $0x2d]]
    %s70 = sld [smem:[#allocation2 + $0x2e]]
    %s71 = sld [smem:[#allocation2 + $0x2f]]
    %s72 = sld [smem:[#allocation2 + $0x30]]
    %s73 = sld [smem:[#allocation2 + $0x31]]
    %s74 = sld [smem:[#allocation2 + $0x32]]
    %s75 = sld [smem:[#allocation2 + $0x33]]
    %s76 = sld [smem:[#allocation2 + $0x34]]
    %s77 = sld [smem:[#allocation2 + $0x35]]
    %s78 = sld [smem:[#allocation2 + $0x36]]
    %s79 = sld [smem:[#allocation2 + $0x37]]
    %s80 = sld [smem:[#allocation2 + $0x38]]
    %s81 = sld [smem:[#allocation2 + $0x39]]
    %s82 = sld [smem:[#allocation2 + $0x3a]]
    %s83 = sld [smem:[#allocation2 + $0x3b]]
    %s84 = sld [smem:[#allocation2 + $0x3c]]
    %s85 = sld [smem:[#allocation2 + $0x3d]]
    %s86 = sld [smem:[#allocation2 + $0x3e]]
    %s87 = sld [smem:[#allocation2 + $0x3f]]
    %s88 = sld [smem:[#allocation2 + $0x40]]
    %s89 = sld [smem:[#allocation2 + $0x41]]
    %s90 = sld [smem:[#allocation2 + $0x42]]
    %s91 = sld [smem:[#allocation2 + $0x43]]
    %s92 = sld [smem:[#allocation2 + $0x44]]
    %s93 = sld [smem:[#allocation2 + $0x45]]
    %s94 = sld [smem:[#allocation2 + $0x46]]
    %s95 = sld [smem:[#allocation2 + $0x47]]
    %s96 = sld [smem:[#allocation2 + $0x48]]
    %s97 = sld [smem:[#allocation2 + $0x49]]
    %s98 = sld [smem:[#allocation2 + $0x4a]]
    %s99 = sld [smem:[#allocation2 + $0x4b]]
    %s100 = sld [smem:[#allocation2 + $0x4c]]
    %s101 = sld [smem:[#allocation2 + $0x4d]]
    %s102 = sld [smem:[#allocation2 + $0x4e]]
    %s103 = sld [smem:[#allocation2 + $0x4f]]
    %s104 = sld [smem:[#allocation2 + $0x50]]
    %s105 = sld [smem:[#allocation2 + $0x51]]
    %s106 = sld [smem:[#allocation2 + $0x52]]
    %s107 = sld [smem:[#allocation2 + $0x53]]
    %s108 = sld [smem:[#allocation2 + $0x54]]
    %s109 = sld [smem:[#allocation2 + $0x55]]
    %s110 = sld [smem:[#allocation2 + $0x56]]
    %v111 = vld [vmem:[%s1] sm:$0x1]
    %s112 = scalar_lea.vmem %s1, 1
    %v113 = vld [vmem:[%s112] sm:$0x1]
    %s114 = scalar_lea.vmem %s1, 2
    %v115 = vld [vmem:[%s114] sm:$0x1]
    %s116 = scalar_lea.vmem %s1, 3
    %v117 = vld [vmem:[%s116] sm:$0x1]
    %s118 = scalar_lea.vmem %s1, 4
    %v119 = vld [vmem:[%s118] sm:$0x1]
    %s120 = scalar_lea.vmem %s1, 5
    %v121 = vld [vmem:[%s120] sm:$0x1]
    %s122 = scalar_lea.vmem %s1, 6
    %v123 = vld [vmem:[%s122] sm:$0x1]
    %s124 = scalar_lea.vmem %s1, 7
    %v125 = vld [vmem:[%s124] sm:$0x1]
    %v126 = vstv %s24
    %v127 = vmul.f32 %v111, %v126
    %v128 = vstv %s72
    %v129 = vadd.f32 %v128, %v127
    %v130 = vstv %s30
    %v131 = vmul.f32 %v113, %v130
    %v132 = vadd.f32 %v129, %v131
    %v133 = vstv %s36
    %v134 = vmul.f32 %v115, %v133
    %v135 = vadd.f32 %v132, %v134
    %v136 = vstv %s42
    %v137 = vmul.f32 %v117, %v136
    %v138 = vadd.f32 %v135, %v137
    %v139 = vstv %s48
    %v140 = vmul.f32 %v119, %v139
    %v141 = vadd.f32 %v138, %v140
    %v142 = vstv %s54
    %v143 = vmul.f32 %v121, %v142
    %v144 = vadd.f32 %v141, %v143
    %v145 = vstv %s60
    %v146 = vmul.f32 %v123, %v145
    %v147 = vadd.f32 %v144, %v146
    %v148 = vstv %s66
    %v149 = vmul.f32 %v125, %v148
    %v150 = vadd.f32 %v147, %v149
    %v151 = vmul.f32 %v150, 0.5
    %v152 = vtanh.pop %v151
    %v153 = vmul.f32 %v152, 0.5
    %v154 = vadd.f32 %v153, 0.5
    %v155 = vstv %s25
    %v156 = vmul.f32 %v111, %v155
    %v157 = vstv %s73
    %v158 = vadd.f32 %v157, %v156
    %v159 = vstv %s31
    %v160 = vmul.f32 %v113, %v159
    %v161 = vadd.f32 %v158, %v160
    %v162 = vstv %s37
    %v163 = vmul.f32 %v115, %v162
    %v164 = vadd.f32 %v161, %v163
    %v165 = vstv %s43
    %v166 = vmul.f32 %v117, %v165
    %v167 = vadd.f32 %v164, %v166
    %v168 = vstv %s49
    %v169 = vmul.f32 %v119, %v168
    %v170 = vadd.f32 %v167, %v169
    %v171 = vstv %s55
    %v172 = vmul.f32 %v121, %v171
    %v173 = vadd.f32 %v170, %v172
    %v174 = vstv %s61
    %v175 = vmul.f32 %v123, %v174
    %v176 = vadd.f32 %v173, %v175
    %v177 = vstv %s67
    %v178 = vmul.f32 %v125, %v177
    %v179 = vadd.f32 %v176, %v178
    %v180 = vmul.f32 %v179, 0.5
    %v181 = vtanh.pop %v180
    %v182 = vmul.f32 %v181, 0.5
    %v183 = vadd.f32 %v182, 0.5
    %v184 = vstv %s26
    %v185 = vmul.f32 %v111, %v184
    %v186 = vstv %s74
    %v187 = vadd.f32 %v186, %v185
    %v188 = vstv %s32
    %v189 = vmul.f32 %v113, %v188
    %v190 = vadd.f32 %v187, %v189
    %v191 = vstv %s38
    %v192 = vmul.f32 %v115, %v191
    %v193 = vadd.f32 %v190, %v192
    %v194 = vstv %s44
    %v195 = vmul.f32 %v117, %v194
    %v196 = vadd.f32 %v193, %v195
    %v197 = vstv %s50
    %v198 = vmul.f32 %v119, %v197
    %v199 = vadd.f32 %v196, %v198
    %v200 = vstv %s56
    %v201 = vmul.f32 %v121, %v200
    %v202 = vadd.f32 %v199, %v201
    %v203 = vstv %s62
    %v204 = vmul.f32 %v123, %v203
    %v205 = vadd.f32 %v202, %v204
    %v206 = vstv %s68
    %v207 = vmul.f32 %v125, %v206
    %v208 = vadd.f32 %v205, %v207
    %v209 = vmul.f32 %v208, 0.5
    %v210 = vtanh.pop %v209
    %v211 = vmul.f32 %v210, 0.5
    %v212 = vadd.f32 %v211, 0.5
    %v213 = vstv %s27
    %v214 = vmul.f32 %v111, %v213
    %v215 = vstv %s75
    %v216 = vadd.f32 %v215, %v214
    %v217 = vstv %s33
    %v218 = vmul.f32 %v113, %v217
    %v219 = vadd.f32 %v216, %v218
    %v220 = vstv %s39
    %v221 = vmul.f32 %v115, %v220
    %v222 = vadd.f32 %v219, %v221
    %v223 = vstv %s45
    %v224 = vmul.f32 %v117, %v223
    %v225 = vadd.f32 %v222, %v224
    %v226 = vstv %s51
    %v227 = vmul.f32 %v119, %v226
    %v228 = vadd.f32 %v225, %v227
    %v229 = vstv %s57
    %v230 = vmul.f32 %v121, %v229
    %v231 = vadd.f32 %v228, %v230
    %v232 = vstv %s63
    %v233 = vmul.f32 %v123, %v232
    %v234 = vadd.f32 %v231, %v233
    %v235 = vstv %s69
    %v236 = vmul.f32 %v125, %v235
    %v237 = vadd.f32 %v234, %v236
    %v238 = vmul.f32 %v237, 0.5
    %v239 = vtanh.pop %v238
    %v240 = vmul.f32 %v239, 0.5
    %v241 = vadd.f32 %v240, 0.5
    %v242 = vstv %s28
    %v243 = vmul.f32 %v111, %v242
    %v244 = vstv %s76
    %v245 = vadd.f32 %v244, %v243
    %v246 = vstv %s34
    %v247 = vmul.f32 %v113, %v246
    %v248 = vadd.f32 %v245, %v247
    %v249 = vstv %s40
    %v250 = vmul.f32 %v115, %v249
    %v251 = vadd.f32 %v248, %v250
    %v252 = vstv %s46
    %v253 = vmul.f32 %v117, %v252
    %v254 = vadd.f32 %v251, %v253
    %v255 = vstv %s52
    %v256 = vmul.f32 %v119, %v255
    %v257 = vadd.f32 %v254, %v256
    %v258 = vstv %s58
    %v259 = vmul.f32 %v121, %v258
    %v260 = vadd.f32 %v257, %v259
    %v261 = vstv %s64
    %v262 = vmul.f32 %v123, %v261
    %v263 = vadd.f32 %v260, %v262
    %v264 = vstv %s70
    %v265 = vmul.f32 %v125, %v264
    %v266 = vadd.f32 %v263, %v265
    %v267 = vmul.f32 %v266, 0.5
    %v268 = vtanh.pop %v267
    %v269 = vmul.f32 %v268, 0.5
    %v270 = vadd.f32 %v269, 0.5
    %v271 = vstv %s29
    %v272 = vmul.f32 %v111, %v271
    %v273 = vstv %s77
    %v274 = vadd.f32 %v273, %v272
    %v275 = vstv %s35
    %v276 = vmul.f32 %v113, %v275
    %v277 = vadd.f32 %v274, %v276
    %v278 = vstv %s41
    %v279 = vmul.f32 %v115, %v278
    %v280 = vadd.f32 %v277, %v279
    %v281 = vstv %s47
    %v282 = vmul.f32 %v117, %v281
    %v283 = vadd.f32 %v280, %v282
    %v284 = vstv %s53
    %v285 = vmul.f32 %v119, %v284
    %v286 = vadd.f32 %v283, %v285
    %v287 = vstv %s59
    %v288 = vmul.f32 %v121, %v287
    %v289 = vadd.f32 %v286, %v288
    %v290 = vstv %s65
    %v291 = vmul.f32 %v123, %v290
    %v292 = vadd.f32 %v289, %v291
    %v293 = vstv %s71
    %v294 = vmul.f32 %v125, %v293
    %v295 = vadd.f32 %v292, %v294
    %v296 = vmul.f32 %v295, 0.5
    %v297 = vtanh.pop %v296
    %v298 = vmul.f32 %v297, 0.5
    %v299 = vadd.f32 %v298, 0.5
    %v300 = vstv %s78
    %v301 = vmul.f32 %v154, %v300
    %v302 = vstv %s102
    %v303 = vadd.f32 %v302, %v301
    %v304 = vstv %s82
    %v305 = vmul.f32 %v183, %v304
    %v306 = vadd.f32 %v303, %v305
    %v307 = vstv %s86
    %v308 = vmul.f32 %v212, %v307
    %v309 = vadd.f32 %v306, %v308
    %v310 = vstv %s90
    %v311 = vmul.f32 %v241, %v310
    %v312 = vadd.f32 %v309, %v311
    %v313 = vstv %s94
    %v314 = vmul.f32 %v270, %v313
    %v315 = vadd.f32 %v312, %v314
    %v316 = vstv %s98
    %v317 = vmul.f32 %v299, %v316
    %v318 = vadd.f32 %v315, %v317
    %v319 = vmul.f32 %v318, 0.5
    %v320 = vtanh.pop %v319
    %v321 = vmul.f32 %v320, 0.5
    %v322 = vadd.f32 %v321, 0.5
    %v323 = vstv %s79
    %v324 = vmul.f32 %v154, %v323
    %v325 = vstv %s103
    %v326 = vadd.f32 %v325, %v324
    %v327 = vstv %s83
    %v328 = vmul.f32 %v183, %v327
    %v329 = vadd.f32 %v326, %v328
    %v330 = vstv %s87
    %v331 = vmul.f32 %v212, %v330
    %v332 = vadd.f32 %v329, %v331
    %v333 = vstv %s91
    %v334 = vmul.f32 %v241, %v333
    %v335 = vadd.f32 %v332, %v334
    %v336 = vstv %s95
    %v337 = vmul.f32 %v270, %v336
    %v338 = vadd.f32 %v335, %v337
    %v339 = vstv %s99
    %v340 = vmul.f32 %v299, %v339
    %v341 = vadd.f32 %v338, %v340
    %v342 = vmul.f32 %v341, 0.5
    %v343 = vtanh.pop %v342
    %v344 = vmul.f32 %v343, 0.5
    %v345 = vadd.f32 %v344, 0.5
    %v346 = vstv %s80
    %v347 = vmul.f32 %v154, %v346
    %v348 = vstv %s104
    %v349 = vadd.f32 %v348, %v347
    %v350 = vstv %s84
    %v351 = vmul.f32 %v183, %v350
    %v352 = vadd.f32 %v349, %v351
    %v353 = vstv %s88
    %v354 = vmul.f32 %v212, %v353
    %v355 = vadd.f32 %v352, %v354
    %v356 = vstv %s92
    %v357 = vmul.f32 %v241, %v356
    %v358 = vadd.f32 %v355, %v357
    %v359 = vstv %s96
    %v360 = vmul.f32 %v270, %v359
    %v361 = vadd.f32 %v358, %v360
    %v362 = vstv %s100
    %v363 = vmul.f32 %v299, %v362
    %v364 = vadd.f32 %v361, %v363
    %v365 = vmul.f32 %v364, 0.5
    %v366 = vtanh.pop %v365
    %v367 = vmul.f32 %v366, 0.5
    %v368 = vadd.f32 %v367, 0.5
    %v369 = vstv %s81
    %v370 = vmul.f32 %v154, %v369
    %v371 = vstv %s105
    %v372 = vadd.f32 %v371, %v370
    %v373 = vstv %s85
    %v374 = vmul.f32 %v183, %v373
    %v375 = vadd.f32 %v372, %v374
    %v376 = vstv %s89
    %v377 = vmul.f32 %v212, %v376
    %v378 = vadd.f32 %v375, %v377
    %v379 = vstv %s93
    %v380 = vmul.f32 %v241, %v379
    %v381 = vadd.f32 %v378, %v380
    %v382 = vstv %s97
    %v383 = vmul.f32 %v270, %v382
    %v384 = vadd.f32 %v381, %v383
    %v385 = vstv %s101
    %v386 = vmul.f32 %v299, %v385
    %v387 = vadd.f32 %v384, %v386
    %v388 = vmul.f32 %v387, 0.5
    %v389 = vtanh.pop %v388
    %v390 = vmul.f32 %v389, 0.5
    %v391 = vadd.f32 %v390, 0.5
    %v392 = vstv %s106
    %v393 = vmul.f32 %v322, %v392
    %v394 = vstv %s110
    %v395 = vadd.f32 %v394, %v393
    %v396 = vstv %s107
    %v397 = vmul.f32 %v345, %v396
    %v398 = vadd.f32 %v395, %v397
    %v399 = vstv %s108
    %v400 = vmul.f32 %v368, %v399
    %v401 = vadd.f32 %v398, %v400
    %v402 = vstv %s109
    %v403 = vmul.f32 %v391, %v402
    %v404 = vadd.f32 %v401, %v403
    %v405 = vmul.f32 %v404, 0.5
    %v406 = vtanh.pop %v405
    %v407 = vmul.f32 %v406, 0.5
    %v408 = vadd.f32 %v407, 0.5
    %409 = vst [vmem:[%s2] sm:$0x1] %v408
    // Predicated region
    $region14: #{mlp_forward.1} parent=1 // pred_check
      _
    $region15: #{mlp_forward.1} parent=1 // pred_check_branch
      %411 = sbr.rel (0) target = $region17
    $region16: #{mlp_forward.1} parent=1 // pred_region
      _
    $region17: #{mlp_forward.1} parent=1 // pred_fallthru
      _
    // Predicated region
    $region18: #{mlp_forward.1} parent=1 // pred_check
      _
    $region19: #{mlp_forward.1} parent=1 // pred_check_branch
      %413 = sbr.rel (0) target = $region21
    $region20: #{mlp_forward.1} parent=1 // pred_region
      _
    $region21: #{mlp_forward.1} parent=1 // pred_fallthru
      _
    %414 = vsyncpa [#allocation3], 1

</llo_original>
